<compile_context>
chip_gen: v7x
topology: tpu7x:2x2x1
jax: 0.10.0
libtpu: 0.0.40
codegen_flags: <defaults>
</compile_context>

<pallas_src>
from typing import NamedTuple

import jax
import jax.numpy as jnp
from jax.experimental import pallas as pl
from jax.experimental.pallas import tpu as pltpu


def _round_up(x, q):
    return ((x + q - 1) // q) * q


# ----------------------------- Pallas kernel --------------------------------
def _ffn_kernel(x_ref, w1_ref, b1_ref, w2_ref, b2_ref, o_ref, acc_ref):
    # x_ref  : (tm, D)    w1_ref : (D, tf)    b1_ref : (1, tf) f32
    # w2_ref : (tf, D)    b2_ref : (1, D) f32  o_ref : (tm, D)
    # acc_ref: (tm, D) f32 scratch, resident across the hidden (f) axis.
    f = pl.program_id(1)

    # fc1 chunk (MXU, f32 accumulation) + bias + ReLU (VPU).
    h = jnp.dot(x_ref[...], w1_ref[...], preferred_element_type=jnp.float32)
    h = jnp.maximum(h + b1_ref[...], 0.0)

    # fc2 partial product for this hidden chunk.  Cast h to the weight dtype so
    # bf16 weights run at bf16 MXU rate; accumulation stays f32 either way.
    partial = jnp.dot(h.astype(w2_ref.dtype), w2_ref[...],
                      preferred_element_type=jnp.float32)

    @pl.when(f == 0)
    def _():
        # Initialize the accumulator directly (no zero-fill + read-modify-write)
        # and fold the output bias in here instead of in the epilogue.
        acc_ref[...] = partial + b2_ref[...]

    @pl.when(f > 0)
    def _():
        acc_ref[...] += partial

    @pl.when(f == pl.num_programs(1) - 1)
    def _():
        o_ref[...] = acc_ref[...].astype(o_ref.dtype)


# ------------------------- one-time parameter prep ---------------------------
class FFNParams(NamedTuple):
    w1t: jax.Array   # (D, F_pad)   MXU-native layout
    b1r: jax.Array   # (1, F_pad)   f32
    w2t: jax.Array   # (F_pad, D)
    b2r: jax.Array   # (1, D)       f32
    tf: int          # hidden tile (multiple of 128, divides F_pad)


def prepare_ffn_params(w1, b1, w2, b2, *, compute_dtype=None, tf_target=512):
    """Init-time layout plumbing (call once, outside the hot loop).

    * Transposes the PyTorch (out_features, in_features) weights to (in, out)
      so the MXU consumes them directly — no per-call HBM transposes.
    * Optionally casts weights to `compute_dtype` (bf16 recommended: halves
      weight DMA bytes, bf16 MXU rate).  Biases stay f32.
    * Pads the hidden dim to a multiple of the hidden tile with zeros; padded
      columns/rows contribute exactly 0 to the result.
    """
    F, D = w1.shape
    assert w2.shape == (D, F) and b1.shape == (F,) and b2.shape == (D,)
    w_dtype = compute_dtype if compute_dtype is not None else w1.dtype

    tf = min(_round_up(F, 128), max(128, _round_up(tf_target, 128)))
    F_pad = _round_up(F, tf)

    w1t = jnp.transpose(w1).astype(w_dtype)                  # (D, F)
    w2t = jnp.transpose(w2).astype(w_dtype)                  # (F, D)
    b1r = b1.astype(jnp.float32).reshape(1, F)
    if F_pad != F:
        w1t = jnp.pad(w1t, ((0, 0), (0, F_pad - F)))
        w2t = jnp.pad(w2t, ((0, F_pad - F), (0, 0)))
        b1r = jnp.pad(b1r, ((0, 0), (0, F_pad - F)))
    b2r = b2.astype(jnp.float32).reshape(1, D)
    return FFNParams(w1t, b1r, w2t, b2r, tf)


# ------------------------------- forward pass --------------------------------
def feed_forward(x, params: FFNParams, *, tm_target=1024, min_row_tiles=1,
                 vmem_budget_bytes=48 * 1024 * 1024):
    """Fused FeedForward forward pass: y = relu(x @ W1 + b1) @ W2 + b2.

    x: (..., model_dim).  `params` from prepare_ffn_params.
    Set min_row_tiles=2 on v7x so both TensorCores get row work.
    """
    *lead, D = x.shape
    M = 1
    for s in lead:
        M *= s

    w1t, b1r, w2t, b2r, tf = params
    F_pad = w1t.shape[1]
    assert w1t.shape[0] == D and w2t.shape == (F_pad, D)

    x2 = x.reshape(M, D)
    if x2.dtype != w1t.dtype:
        x2 = x2.astype(w1t.dtype)          # activations in the compute dtype

    # --- row tile: as large as the budget allows (weight HBM traffic scales
    #     as (M/tm) * (|W1| + |W2|)), sublane-aligned.
    tm = max(8, min(_round_up(tm_target, 8), _round_up(M, 8)))
    while min_row_tiles > 1 and _round_up(M, 8) // tm < min_row_tiles and tm > 8:
        tm = max(8, _round_up(tm // 2, 8))  # give both v7x TCs some rows

    def _footprint(tm_):
        isz = jnp.dtype(x2.dtype).itemsize
        osz = jnp.dtype(x.dtype).itemsize
        blocks = (tm_ * D * isz            # x block
                  + D * tf * isz           # W1 block
                  + tf * 4                 # b1 block
                  + tf * D * isz           # W2 block
                  + D * 4                  # b2 block
                  + tm_ * D * osz)         # out block
        return 2 * blocks + tm_ * D * 4    # double-buffered blocks + f32 acc

    # Shrink tm if the double-buffered footprint would exceed the VMEM budget
    # (64 MiB physical on v7x; default budget leaves headroom everywhere).
    while _footprint(tm) > vmem_budget_bytes and tm > 8:
        tm = max(8, _round_up(tm // 2, 8))
    # Note: for very large D (>= 8192) a third grid axis tiling D for the fc1
    # contraction would bound per-block VMEM without shrinking tm/tf.

    # Pad ragged M to a multiple of tm instead of a full-extent fallback tile.
    M_pad = _round_up(M, tm)
    if M_pad != M:
        x2 = jnp.pad(x2, ((0, M_pad - M), (0, 0)))

    grid = (M_pad // tm, F_pad // tf)

    vmem_limit = int(min(max(_footprint(tm) * 1.25, 16 * 1024 * 1024),
                         64 * 1024 * 1024))

    cost = pl.CostEstimate(
        flops=4 * M_pad * F_pad * D,       # two matmuls, 2 flops per MAC
        transcendentals=0,
        bytes_accessed=(x2.size * x2.dtype.itemsize
                        + w1t.size * w1t.dtype.itemsize
                        + w2t.size * w2t.dtype.itemsize
                        + b1r.size * 4 + b2r.size * 4
                        + M_pad * D * jnp.dtype(x.dtype).itemsize),
    )

    out = pl.pallas_call(
        _ffn_kernel,
        out_shape=jax.ShapeDtypeStruct((M_pad, D), x.dtype),
        grid_spec=pltpu.PrefetchScalarGridSpec(
            num_scalar_prefetch=0,
            grid=grid,
            in_specs=[
                pl.BlockSpec((tm, D), lambda m, f: (m, 0)),   # x rows
                pl.BlockSpec((D, tf), lambda m, f: (0, f)),   # W1 chunk
                pl.BlockSpec((1, tf), lambda m, f: (0, f)),   # b1 chunk
                pl.BlockSpec((tf, D), lambda m, f: (f, 0)),   # W2 chunk
                pl.BlockSpec((1, D), lambda m, f: (0, 0)),    # b2 (constant)
            ],
            out_specs=pl.BlockSpec((tm, D), lambda m, f: (m, 0)),
            scratch_shapes=[pltpu.VMEM((tm, D), jnp.float32)],
        ),
        compiler_params=pltpu.CompilerParams(
            # rows independent -> "parallel" (megacore-shardable on v7x);
            # hidden-chunk reduction is the innermost "arbitrary" axis.
            dimension_semantics=("parallel", "arbitrary"),
            vmem_limit_bytes=vmem_limit,
        ),
        cost_estimate=cost,
    )(x2, w1t, b1r, w2t, b2r)

    if M_pad != M:
        out = out[:M]
    return out.reshape(*lead, D)


# --------------------------------- main --------------------------------------
if __name__ == "__main__":
    batch, seq, model_dim, ff_dim = 2, 8, 128, 256

    key = jax.random.PRNGKey(0)
    kx, k1, k2, k3, k4 = jax.random.split(key, 5)
    x = jax.random.normal(kx, (batch, seq, model_dim), dtype=jnp.float32)
    # PyTorch nn.Linear parameter layout: weight (out_features, in_features).
    w1 = jax.random.normal(k1, (ff_dim, model_dim), jnp.float32) / (model_dim ** 0.5)
    b1 = jax.random.normal(k2, (ff_dim,), jnp.float32) * 0.01
    w2 = jax.random.normal(k3, (model_dim, ff_dim), jnp.float32) / (ff_dim ** 0.5)
    b2 = jax.random.normal(k4, (model_dim,), jnp.float32) * 0.01

    # Pure-JAX reference with identical semantics.
    ref = jnp.maximum(x @ w1.T + b1, 0.0) @ w2.T + b2

    # f32 path with small tile targets so the demo exercises a real (2, 2) grid
    # (accumulated hidden axis + parallel row axis).
    params_f32 = prepare_ffn_params(w1, b1, w2, b2, tf_target=128)
    out = jax.block_until_ready(feed_forward(x, params_f32, tm_target=8))
    assert out.shape == ref.shape == (batch, seq, model_dim)
    assert jnp.allclose(out, ref, atol=2e-2, rtol=2e-2), "f32 mismatch vs reference"

    # Ragged-M path: M = 2*7 = 14 rows pads to 16 and is sliced back.
    x_rag = x[:, :7, :]
    ref_rag = jnp.maximum(x_rag @ w1.T + b1, 0.0) @ w2.T + b2
    out_rag = jax.block_until_ready(feed_forward(x_rag, params_f32, tm_target=8))
    assert out_rag.shape == ref_rag.shape
    assert jnp.allclose(out_rag, ref_rag, atol=2e-2, rtol=2e-2), "ragged-M mismatch"

    # bf16 weights/activations with f32 accumulation (production config).
    params_bf16 = prepare_ffn_params(w1, b1, w2, b2, compute_dtype=jnp.bfloat16)
    out_bf16 = jax.block_until_ready(feed_forward(x, params_bf16))
    assert jnp.allclose(out_bf16.astype(jnp.float32), ref, atol=1e-1, rtol=1e-1), \
        "bf16 mismatch vs f32 reference"

    print("KERNEL_OK")
</pallas_src>

<mosaic_0001>
module attributes {stable_mosaic.version = 11 : i64} {
  func.func @_ffn_kernel(%arg0: i32, %arg1: i32, %arg2: memref<8x128xf32, #tpu.memory_space<vmem>>, %arg3: memref<128x128xf32, #tpu.memory_space<vmem>>, %arg4: memref<1x128xf32, #tpu.memory_space<vmem>>, %arg5: memref<128x128xf32, #tpu.memory_space<vmem>>, %arg6: memref<1x128xf32, #tpu.memory_space<vmem>>, %arg7: memref<8x128xf32, #tpu.memory_space<vmem>>, %arg8: memref<8x128xf32, #tpu.memory_space<vmem>>) attributes {dimension_semantics = [#tpu.dimension_semantics<parallel>, #tpu.dimension_semantics<arbitrary>], iteration_bounds = array<i64: 2, 2>, scalar_prefetch = 0 : i64, scratch_operands = 1 : i64, tpu.core_type = #tpu.core_type<tc>, window_params = [{transform_indices = @transform_0, window_bounds = array<i64: 8, 128>}, {transform_indices = @transform_1, window_bounds = array<i64: 128, 128>}, {transform_indices = @transform_2, window_bounds = array<i64: 1, 128>}, {transform_indices = @transform_3, window_bounds = array<i64: 128, 128>}, {pipeline_mode = #tpu.pipeline_mode<synchronous>, transform_indices = @transform_4, window_bounds = array<i64: 1, 128>}, {transform_indices = @transform_5, window_bounds = array<i64: 8, 128>}]} {
    %c0 = arith.constant 0 : index
    %c0_0 = arith.constant 0 : index
    %0 = vector.load %arg2[%c0, %c0_0] : memref<8x128xf32, #tpu.memory_space<vmem>>, vector<8x128xf32>
    %c0_1 = arith.constant 0 : index
    %c0_2 = arith.constant 0 : index
    %1 = vector.load %arg3[%c0_1, %c0_2] : memref<128x128xf32, #tpu.memory_space<vmem>>, vector<128x128xf32>
    %cst = arith.constant dense<0.000000e+00> : vector<8x128xf32>
    %2 = tpu.matmul %0, %1, %cst {dimension_numbers = #tpu.dot_dimension_numbers<[1], [0], [0], [1], [0, 0, 1, 1], [], []>} : vector<8x128xf32>, vector<128x128xf32>, vector<8x128xf32> -> vector<8x128xf32>
    %c0_3 = arith.constant 0 : index
    %c0_4 = arith.constant 0 : index
    %3 = vector.load %arg4[%c0_3, %c0_4] : memref<1x128xf32, #tpu.memory_space<vmem>>, vector<1x128xf32>
    %4 = vector.broadcast %3 : vector<1x128xf32> to vector<8x128xf32>
    %5 = arith.addf %2, %4 : vector<8x128xf32>
    %cst_5 = arith.constant 0.000000e+00 : f32
    %6 = vector.broadcast %cst_5 : f32 to vector<8x128xf32>
    %7 = arith.maximumf %5, %6 : vector<8x128xf32>
    %c0_6 = arith.constant 0 : index
    %c0_7 = arith.constant 0 : index
    %8 = vector.load %arg5[%c0_6, %c0_7] : memref<128x128xf32, #tpu.memory_space<vmem>>, vector<128x128xf32>
    %cst_8 = arith.constant dense<0.000000e+00> : vector<8x128xf32>
    %9 = tpu.matmul %7, %8, %cst_8 {dimension_numbers = #tpu.dot_dimension_numbers<[1], [0], [0], [1], [0, 0, 1, 1], [], []>} : vector<8x128xf32>, vector<128x128xf32>, vector<8x128xf32> -> vector<8x128xf32>
    %c0_i32 = arith.constant 0 : i32
    %10 = arith.cmpi eq, %arg1, %c0_i32 : i32
    %11 = arith.extui %10 : i1 to i32
    %c0_i32_9 = arith.constant 0 : i32
    %12 = arith.cmpi ne, %11, %c0_i32_9 : i32
    scf.if %12 {
      %c0_13 = arith.constant 0 : index
      %c0_14 = arith.constant 0 : index
      %19 = vector.load %arg6[%c0_13, %c0_14] : memref<1x128xf32, #tpu.memory_space<vmem>>, vector<1x128xf32>
      %20 = vector.broadcast %19 : vector<1x128xf32> to vector<8x128xf32>
      %21 = arith.addf %9, %20 : vector<8x128xf32>
      %c0_15 = arith.constant 0 : index
      %c0_16 = arith.constant 0 : index
      %22 = vector.load %arg8[%c0_15, %c0_16] : memref<8x128xf32, #tpu.memory_space<vmem>>, vector<8x128xf32>
      tpu.vector_store %arg8[%c0_15, %c0_16], %21 {strides = array<i32>} : memref<8x128xf32, #tpu.memory_space<vmem>>, vector<8x128xf32>,
    } else {
    }
    %c0_i32_10 = arith.constant 0 : i32
    %13 = arith.cmpi sgt, %arg1, %c0_i32_10 : i32
    %14 = arith.extui %13 : i1 to i32
    %c0_i32_11 = arith.constant 0 : i32
    %15 = arith.cmpi ne, %14, %c0_i32_11 : i32
    scf.if %15 {
      %c0_13 = arith.constant 0 : index
      %c0_14 = arith.constant 0 : index
      %19 = vector.load %arg8[%c0_13, %c0_14] : memref<8x128xf32, #tpu.memory_space<vmem>>, vector<8x128xf32>
      %20 = arith.addf %19, %9 : vector<8x128xf32>
      %c0_15 = arith.constant 0 : index
      %c0_16 = arith.constant 0 : index
      %21 = vector.load %arg8[%c0_15, %c0_16] : memref<8x128xf32, #tpu.memory_space<vmem>>, vector<8x128xf32>
      tpu.vector_store %arg8[%c0_15, %c0_16], %20 {strides = array<i32>} : memref<8x128xf32, #tpu.memory_space<vmem>>, vector<8x128xf32>,
    } else {
    }
    %c1_i32 = arith.constant 1 : i32
    %16 = arith.cmpi eq, %arg1, %c1_i32 : i32
    %17 = arith.extui %16 : i1 to i32
    %c0_i32_12 = arith.constant 0 : i32
    %18 = arith.cmpi ne, %17, %c0_i32_12 : i32
    scf.if %18 {
      %c0_13 = arith.constant 0 : index
      %c0_14 = arith.constant 0 : index
      %19 = vector.load %arg8[%c0_13, %c0_14] : memref<8x128xf32, #tpu.memory_space<vmem>>, vector<8x128xf32>
      %c0_15 = arith.constant 0 : index
      %c0_16 = arith.constant 0 : index
      %20 = vector.load %arg7[%c0_15, %c0_16] : memref<8x128xf32, #tpu.memory_space<vmem>>, vector<8x128xf32>
      tpu.vector_store %arg7[%c0_15, %c0_16], %19 {strides = array<i32>} : memref<8x128xf32, #tpu.memory_space<vmem>>, vector<8x128xf32>,
    } else {
    }
    return
  }
  func.func @transform_0(%arg0: i32, %arg1: i32) -> (i32, i32) {
    %c0_i32 = arith.constant 0 : i32
    %c0_i32_0 = arith.constant 0 : i32
    return %arg0, %c0_i32 : i32, i32
  }
  func.func @transform_1(%arg0: i32, %arg1: i32) -> (i32, i32) {
    %c0_i32 = arith.constant 0 : i32
    %c0_i32_0 = arith.constant 0 : i32
    return %c0_i32, %arg1 : i32, i32
  }
  func.func @transform_2(%arg0: i32, %arg1: i32) -> (i32, i32) {
    %c0_i32 = arith.constant 0 : i32
    %c0_i32_0 = arith.constant 0 : i32
    return %c0_i32, %arg1 : i32, i32
  }
  func.func @transform_3(%arg0: i32, %arg1: i32) -> (i32, i32) {
    %c0_i32 = arith.constant 0 : i32
    %c0_i32_0 = arith.constant 0 : i32
    return %arg1, %c0_i32 : i32, i32
  }
  func.func @transform_4(%arg0: i32, %arg1: i32) -> (i32, i32) {
    %c0_i32 = arith.constant 0 : i32
    %c0_i32_0 = arith.constant 0 : i32
    %c0_i32_1 = arith.constant 0 : i32
    return %c0_i32, %c0_i32_0 : i32, i32
  }
  func.func @transform_5(%arg0: i32, %arg1: i32) -> (i32, i32) {
    %c0_i32 = arith.constant 0 : i32
    %c0_i32_0 = arith.constant 0 : i32
    return %arg0, %c0_i32 : i32, i32
  }
}

</mosaic_0001>

<llo_original>
// kernel: tpu_custom_call.1
$region0: #{tpu_custom_call.1}
  #allocation0 [shape = 'u32[]', space=smem, size = 0x4, offset = 0x4, fixed_abs, tag = 'smem constant byte address 0x4 - core index']
  #allocation1 [shape = 'u32[144,128]{1,0:T(1,128)}', space=vmem, size = 0x12000, scoped, tag = 'internal scratch']
  #allocation2 [shape = 'f32[8,128]{1,0:T(8,128)}', space=vmem, size = 0x1000, scoped, tag = 'scratch operand']
  %s0 = inlined_call_operand.hbm [shape: f32[16,128], index: 0, kind: input, shape index: {}]
  %s1 = inlined_call_operand.hbm [shape: f32[128,256], index: 1, kind: input, shape index: {}]
  %s2 = inlined_call_operand.vmem [shape: f32[1,256], index: 2, kind: input, shape index: {}]
  %s3 = inlined_call_operand.hbm [shape: f32[256,128], index: 3, kind: input, shape index: {}]
  %s4 = inlined_call_operand.vmem [shape: f32[1,128], index: 4, kind: input, shape index: {}]
  %s5 = inlined_call_operand.hbm [shape: f32[16,128], index: 5, kind: output, shape index: {}]
  %s6 = sld [smem:[#allocation0]]
  $region77: #{tpu_custom_call.1} parent=0
    _
  %s8 = ssub.s32 1, %s6
  %s9 = scalar_select 0, %s8, %s6
  $region1: #{tpu_custom_call.1} parent=0
    #allocation3 [shape = 'u8[8192]{0}', space=vmem, size = 0x2000, scoped, tag = 'input window, operand 0']
    #allocation4 [shape = 's32[2]{0}', space=sflag, size = 0x8, scoped, tag = 'scoped memory for tpu_custom_call.1']
    #allocation5 [shape = 's32[2]{0}', space=sflag, size = 0x8, scoped, tag = 'scoped memory for tpu_custom_call.1']
    #allocation6 [shape = 'u8[131072]{0}', space=vmem, size = 0x20000, scoped, tag = 'input window, operand 1']
    #allocation7 [shape = 's32[2]{0}', space=sflag, size = 0x8, scoped, tag = 'scoped memory for tpu_custom_call.1']
    #allocation8 [shape = 'u8[131072]{0}', space=vmem, size = 0x20000, scoped, tag = 'input window, operand 3']
    #allocation9 [shape = 'u8[8192]{0}', space=vmem, size = 0x2000, scoped, tag = 'output window, operand 0']
    %10 = vsyncpa [#allocation4], 0
    %s11 = scalar_lea.sflag [#allocation4], 1
    %12 = vsyncpa %s11, 0
    %13 = vsyncpa [#allocation7], 0
    %s14 = scalar_lea.sflag [#allocation7], 1
    %15 = vsyncpa %s14, 0
    %16 = vsyncpa [#allocation5], 0
    %s17 = scalar_lea.sflag [#allocation5], 1
    %18 = vsyncpa %s17, 0
    loop: start=0, step=1, limit=6
    $region2: #{tpu_custom_call.1} parent=1 // loop_pre_header
      _
    $region3: #{tpu_custom_call.1} parent=1 // loop_header
      %s20 = sphi 0, %s24
      %p21 = scmp.ge.s32.totalorder %s20, 6
      %s27 = sphi 0, %s39
      %s28 = sphi 0, %s35
      %s29 = sphi 0, %s27
      %s30 = sphi 0, %s28
      %s31 = sphi 0, %s29
      %s32 = sphi 0, %s30
      %s42 = sphi 0, %s44
      %s45 = sphi 0, %s42
      %s46 = sphi 0, %s45
      %s62 = sphi 0, %s46
      %s68 = sphi 0, %s70
      %s71 = sphi 0, %s68
      %s72 = sphi 0, %s71
      %s88 = sphi 0, %s72
      %s94 = sphi 0, %s96
      %s97 = sphi 0, %s94
      %s98 = sphi 0, %s97
      %s114 = sphi 0, %s98
      %s120 = sphi 0, %s122
      %s123 = sphi 0, %s120
      %s124 = sphi 0, %s123
      %s140 = sphi 0, %s124
      %s144 = sphi 0, %s144
      %s146 = sphi 0, %s144
      %s147 = sphi 0, %s146
      %s161 = sphi 0, %s147
      %s167 = sphi 0, %s169
      %s170 = sphi 0, %s167
      %s171 = sphi 0, %s170
      %s187 = sphi 0, %s171
    $region4: #{tpu_custom_call.1} parent=1 // loop_header_branch
      %23 = sbr.rel (%p21) target = $region8
    $region5: #{tpu_custom_call.1} parent=1 // loop_body
      %s25 = ssub.s32 %s20, 1
      %s26 = ssub.s32 %s20, 2
      %s33 = sadd.s32 1, %s28
      %p34 = scmp.ge.s32.totalorder %s33, 2
      %s35 = scalar_select %p34, 0, %s33
      %s36 = sadd.s32 1, %s27
      %s37 = scalar_select %p34, %s36, %s27
      %p38 = scmp.ge.s32.totalorder %s37, 2
      %s39 = scalar_select %p38, 0, %s37
      %s40 = ssub.s32 %s27, %s39
      %p41 = scmp.eq.s32.totalorder %s40, 0
      %s43 = sadd.s32 %s42, 1
      %s44 = scalar_select %p41, %s42, %s43
      %p47 = pneg %p41
      %p48 = scmp.eq.s32.totalorder %s20, 3
      %p49 = por %p47, %p48
      %p50 = scmp.ne.s32.totalorder %s42, %s45
      %p51 = scmp.eq.s32.totalorder %s20, 0
      %p52 = por %p50, %p51
      %p53 = scmp.ne.s32.totalorder %s42, %s45
      %p54 = scmp.eq.s32.totalorder %s25, 3
      %p55 = por %p53, %p54
      %p56 = scmp.ne.s32.totalorder %s45, %s46
      %p57 = scmp.eq.s32.totalorder %s25, 0
      %p58 = por %p56, %p57
      %p59 = scmp.ne.s32.totalorder %s45, %s46
      %p60 = scmp.eq.s32.totalorder %s26, 3
      %p61 = por %p59, %p60
      %p63 = scmp.ne.s32.totalorder %s46, %s62
      %p64 = scmp.eq.s32.totalorder %s26, 0
      %p65 = por %p63, %p64
      %s66 = ssub.s32 %s28, %s35
      %p67 = scmp.eq.s32.totalorder %s66, 0
      %s69 = sadd.s32 %s68, 1
      %s70 = scalar_select %p67, %s68, %s69
      %p73 = pneg %p67
      %p74 = scmp.eq.s32.totalorder %s20, 3
      %p75 = por %p73, %p74
      %p76 = scmp.ne.s32.totalorder %s68, %s71
      %p77 = scmp.eq.s32.totalorder %s20, 0
      %p78 = por %p76, %p77
      %p79 = scmp.ne.s32.totalorder %s68, %s71
      %p80 = scmp.eq.s32.totalorder %s25, 3
      %p81 = por %p79, %p80
      %p82 = scmp.ne.s32.totalorder %s71, %s72
      %p83 = scmp.eq.s32.totalorder %s25, 0
      %p84 = por %p82, %p83
      %p85 = scmp.ne.s32.totalorder %s71, %s72
      %p86 = scmp.eq.s32.totalorder %s26, 3
      %p87 = por %p85, %p86
      %p89 = scmp.ne.s32.totalorder %s72, %s88
      %p90 = scmp.eq.s32.totalorder %s26, 0
      %p91 = por %p89, %p90
      %s92 = ssub.s32 %s28, %s35
      %p93 = scmp.eq.s32.totalorder %s92, 0
      %s95 = sadd.s32 %s94, 1
      %s96 = scalar_select %p93, %s94, %s95
      %p99 = pneg %p93
      %p100 = scmp.eq.s32.totalorder %s20, 3
      %p101 = por %p99, %p100
      %p102 = scmp.ne.s32.totalorder %s94, %s97
      %p103 = scmp.eq.s32.totalorder %s20, 0
      %p104 = por %p102, %p103
      %p105 = scmp.ne.s32.totalorder %s94, %s97
      %p106 = scmp.eq.s32.totalorder %s25, 3
      %p107 = por %p105, %p106
      %p108 = scmp.ne.s32.totalorder %s97, %s98
      %p109 = scmp.eq.s32.totalorder %s25, 0
      %p110 = por %p108, %p109
      %p111 = scmp.ne.s32.totalorder %s97, %s98
      %p112 = scmp.eq.s32.totalorder %s26, 3
      %p113 = por %p111, %p112
      %p115 = scmp.ne.s32.totalorder %s98, %s114
      %p116 = scmp.eq.s32.totalorder %s26, 0
      %p117 = por %p115, %p116
      %s118 = ssub.s32 %s28, %s35
      %p119 = scmp.eq.s32.totalorder %s118, 0
      %s121 = sadd.s32 %s120, 1
      %s122 = scalar_select %p119, %s120, %s121
      %p125 = pneg %p119
      %p126 = scmp.eq.s32.totalorder %s20, 3
      %p127 = por %p125, %p126
      %p128 = scmp.ne.s32.totalorder %s120, %s123
      %p129 = scmp.eq.s32.totalorder %s20, 0
      %p130 = por %p128, %p129
      %p131 = scmp.ne.s32.totalorder %s120, %s123
      %p132 = scmp.eq.s32.totalorder %s25, 3
      %p133 = por %p131, %p132
      %p134 = scmp.ne.s32.totalorder %s123, %s124
      %p135 = scmp.eq.s32.totalorder %s25, 0
      %p136 = por %p134, %p135
      %p137 = scmp.ne.s32.totalorder %s123, %s124
      %p138 = scmp.eq.s32.totalorder %s26, 3
      %p139 = por %p137, %p138
      %p141 = scmp.ne.s32.totalorder %s124, %s140
      %p142 = scmp.eq.s32.totalorder %s26, 0
      %p143 = por %p141, %p142
      %s145 = sadd.s32 %s144, 1
      %p148 = scmp.eq.s32.totalorder %s20, 3
      %p149 = scmp.ne.s32.totalorder %s144, %s146
      %p150 = scmp.eq.s32.totalorder %s20, 0
      %p151 = por %p149, %p150
      %p152 = scmp.ne.s32.totalorder %s144, %s146
      %p153 = scmp.eq.s32.totalorder %s25, 3
      %p154 = por %p152, %p153
      %p155 = scmp.ne.s32.totalorder %s146, %s147
      %p156 = scmp.eq.s32.totalorder %s25, 0
      %p157 = por %p155, %p156
      %p158 = scmp.ne.s32.totalorder %s146, %s147
      %p159 = scmp.eq.s32.totalorder %s26, 3
      %p160 = por %p158, %p159
      %p162 = scmp.ne.s32.totalorder %s147, %s161
      %p163 = scmp.eq.s32.totalorder %s26, 0
      %p164 = por %p162, %p163
      %s165 = ssub.s32 %s27, %s39
      %p166 = scmp.eq.s32.totalorder %s165, 0
      %s168 = sadd.s32 %s167, 1
      %s169 = scalar_select %p166, %s167, %s168
      %p172 = pneg %p166
      %p173 = scmp.eq.s32.totalorder %s20, 3
      %p174 = por %p172, %p173
      %p175 = scmp.ne.s32.totalorder %s167, %s170
      %p176 = scmp.eq.s32.totalorder %s20, 0
      %p177 = por %p175, %p176
      %p178 = scmp.ne.s32.totalorder %s167, %s170
      %p179 = scmp.eq.s32.totalorder %s25, 3
      %p180 = por %p178, %p179
      %p181 = scmp.ne.s32.totalorder %s170, %s171
      %p182 = scmp.eq.s32.totalorder %s25, 0
      %p183 = por %p181, %p182
      %p184 = scmp.ne.s32.totalorder %s170, %s171
      %p185 = scmp.eq.s32.totalorder %s26, 3
      %p186 = por %p184, %p185
      %p188 = scmp.ne.s32.totalorder %s171, %s187
      %p189 = scmp.eq.s32.totalorder %s26, 0
      %p190 = por %p188, %p189
      %p191 = scmp.le.s32.totalorder 1, %s20
      %p192 = scmp.lt.s32.totalorder %s20, 5
      %p193 = pnand %p191, %p192
      %p194 = pneg %p193
      // Predicated region
      $region9: #{tpu_custom_call.1} parent=5 // pred_check
        _
      $region10: #{tpu_custom_call.1} parent=5 // pred_check_branch
        %196 = sbr.rel (%p193) target = $region12
      $region11: #{tpu_custom_call.1} parent=5 // pred_region
        %s197 = ssub.s32 %s20, 1
        // Predicated region
        $region13: #{tpu_custom_call.1} parent=11 // pred_check
          %p198 = pneg %p157
        $region14: #{tpu_custom_call.1} parent=11 // pred_check_branch
          %200 = sbr.rel (%p198) target = $region16
        $region15: #{tpu_custom_call.1} parent=11 // pred_region
          _
        $region16: #{tpu_custom_call.1} parent=11 // pred_fallthru
          _
      $region12: #{tpu_custom_call.1} parent=5 // pred_fallthru
        _
      %p201 = scmp.lt.s32.totalorder %s20, 4
      // Predicated region
      $region17: #{tpu_custom_call.1} parent=5 // pred_check
        %p202 = pneg %p201
      $region18: #{tpu_custom_call.1} parent=5 // pred_check_branch
        %204 = sbr.rel (%p202) target = $region20
      $region19: #{tpu_custom_call.1} parent=5 // pred_region
        // Predicated region
        $region21: #{tpu_custom_call.1} parent=19 // pred_check
          %p205 = pneg %p52
        $region22: #{tpu_custom_call.1} parent=19 // pred_check_branch
          %207 = sbr.rel (%p205) target = $region24
        $region23: #{tpu_custom_call.1} parent=19 // pred_region
          %s208 = sand.u32 %s42, 1
          %s209 = scalar_lea.sflag [#allocation4], %s208
          %s210 = sand.u32 %s42, 1
          %s211 = smul.addr %s210, 8
          %s212 = scalar_lea.vmem [#allocation3], %s211
          %s214 = ssub.s32 128, 128
          %215 = vsyncadd %s209, %s214
          %s216 = smul.addr %s27, 128
          %s217 = scalar_lea.hbm %s0, %s216
          %s219 = sshll.u32 %s212, 4
          %s220 = int_to_ptr.vmem [resolvable:$true] %s219
          %222 = dma.hbm_to_vmem [thread:$0]  %s217, 128, %s220, %s209
        $region24: #{tpu_custom_call.1} parent=19 // pred_fallthru
          _
        // Predicated region
        $region25: #{tpu_custom_call.1} parent=19 // pred_check
          %p223 = pneg %p78
        $region26: #{tpu_custom_call.1} parent=19 // pred_check_branch
          %225 = sbr.rel (%p223) target = $region28
        $region27: #{tpu_custom_call.1} parent=19 // pred_region
          %s226 = sand.u32 %s20, 1
          %s227 = scalar_lea.sflag [#allocation7], %s226
          %s228 = sand.u32 %s68, 1
          %s229 = smul.addr %s228, 128
          %s230 = scalar_lea.vmem [#allocation6], %s229
          %s232 = ssub.s32 2048, 2048
          %233 = vsyncadd %s227, %s232
          %s234 = smul.addr %s28, 128
          %s235 = scalar_lea.hbm %s1, %s234
          %s236 = sshll.u32 %s230, 4
          %s237 = int_to_ptr.vmem [resolvable:$true] %s236
          %242 = dma.hbm_to_vmem [thread:$0]  %s235, 2048, %s237, %s227, 256, 128, 8
        $region28: #{tpu_custom_call.1} parent=19 // pred_fallthru
          _
        // Predicated region
        $region29: #{tpu_custom_call.1} parent=19 // pred_check
          %p243 = pneg %p104
        $region30: #{tpu_custom_call.1} parent=19 // pred_check_branch
          %245 = sbr.rel (%p243) target = $region32
        $region31: #{tpu_custom_call.1} parent=19 // pred_region
          %p246 = scmp.lt.s32.totalorder %s28, 1
          %s247 = scalar_select %p246, %s28, 1
          %s248 = scalar_lea.vmem %s2, %s247
        $region32: #{tpu_custom_call.1} parent=19 // pred_fallthru
          _
        // Predicated region
        $region33: #{tpu_custom_call.1} parent=19 // pred_check
          %p249 = pneg %p130
        $region34: #{tpu_custom_call.1} parent=19 // pred_check_branch
          %251 = sbr.rel (%p249) target = $region36
        $region35: #{tpu_custom_call.1} parent=19 // pred_region
          %s252 = sand.u32 %s20, 1
          %s253 = scalar_lea.sflag [#allocation7], %s252
          %s254 = sand.u32 %s120, 1
          %s255 = smul.addr %s254, 128
          %s256 = scalar_lea.vmem [#allocation8], %s255
          %s257 = smul.u32 16, %s28
          %s259 = ssub.s32 2048, 2048
          %260 = vsyncadd %s253, %s259
          %s261 = smul.addr %s257, 128
          %s262 = scalar_lea.hbm %s3, %s261
          %s263 = sshll.u32 %s256, 4
          %s264 = int_to_ptr.vmem [resolvable:$true] %s263
          %269 = dma.hbm_to_vmem [thread:$0]  %s262, 2048, %s264, %s253, 128, 128, 8
        $region36: #{tpu_custom_call.1} parent=19 // pred_fallthru
          _
      $region20: #{tpu_custom_call.1} parent=5 // pred_fallthru
        _
      %p270 = scmp.le.s32.totalorder 1, %s20
      %p271 = scmp.lt.s32.totalorder %s20, 5
      %p272 = pnand %p270, %p271
      %p273 = pneg %p272
      // Predicated region
      $region37: #{tpu_custom_call.1} parent=5 // pred_check
        _
      $region38: #{tpu_custom_call.1} parent=5 // pred_check_branch
        %275 = sbr.rel (%p272) target = $region40
      $region39: #{tpu_custom_call.1} parent=5 // pred_region
        %s276 = ssub.s32 %s20, 1
        %s277 = sand.u32 %s45, 1
        %s278 = scalar_lea.sflag [#allocation4], %s277
        %s279 = sand.u32 %s45, 1
        %s280 = smul.addr %s279, 8
        %s281 = scalar_lea.vmem [#allocation3], %s280
        // Predicated region
        $region41: #{tpu_custom_call.1} parent=39 // pred_check
          %p282 = pneg %p58
        $region42: #{tpu_custom_call.1} parent=39 // pred_check_branch
          %284 = sbr.rel (%p282) target = $region44
        $region43: #{tpu_custom_call.1} parent=39 // pred_region
          %285 = dma.done %s278, 128
        $region44: #{tpu_custom_call.1} parent=39 // pred_fallthru
          _
        %s286 = sand.u32 %s25, 1
        %s287 = scalar_lea.sflag [#allocation7], %s286
        %s288 = sand.u32 %s71, 1
        %s289 = smul.addr %s288, 128
        %s290 = scalar_lea.vmem [#allocation6], %s289
        // Predicated region
        $region45: #{tpu_custom_call.1} parent=39 // pred_check
          %p291 = pneg %p84
        $region46: #{tpu_custom_call.1} parent=39 // pred_check_branch
          %293 = sbr.rel (%p291) target = $region48
        $region47: #{tpu_custom_call.1} parent=39 // pred_region
          %294 = dma.done %s287, 2048
        $region48: #{tpu_custom_call.1} parent=39 // pred_fallthru
          _
        %s295 = sand.u32 %s25, 1
        %s296 = scalar_lea.sflag [#allocation7], %s295
        %s297 = sand.u32 %s123, 1
        %s298 = smul.addr %s297, 128
        %s299 = scalar_lea.vmem [#allocation8], %s298
        // Predicated region
        $region49: #{tpu_custom_call.1} parent=39 // pred_check
          %p300 = pneg %p136
        $region50: #{tpu_custom_call.1} parent=39 // pred_check_branch
          %302 = sbr.rel (%p300) target = $region52
        $region51: #{tpu_custom_call.1} parent=39 // pred_region
          %303 = dma.done %s296, 2048
        $region52: #{tpu_custom_call.1} parent=39 // pred_fallthru
          _
        %s304 = sand.u32 %s45, 1
        %s305 = scalar_lea.sflag [#allocation4], %s304
        %s306 = sand.u32 %s45, 1
        %s307 = smul.addr %s306, 8
        %s308 = scalar_lea.vmem [#allocation3], %s307
        %p309 = pneg %p58
        %p310 = pneg %p55
        %s311 = sand.u32 %s25, 1
        %s312 = scalar_lea.sflag [#allocation7], %s311
        %s313 = sand.u32 %s71, 1
        %s314 = smul.addr %s313, 128
        %s315 = scalar_lea.vmem [#allocation6], %s314
        %p316 = pneg %p84
        %p317 = pneg %p81
        %p318 = scmp.lt.s32.totalorder %s30, 1
        %s319 = scalar_select %p318, %s30, 1
        %s320 = scalar_lea.vmem %s2, %s319
        %p321 = pneg %p110
        %p322 = pneg %p107
        %s323 = sand.u32 %s25, 1
        %s324 = scalar_lea.sflag [#allocation7], %s323
        %s325 = sand.u32 %s123, 1
        %s326 = smul.addr %s325, 128
        %s327 = scalar_lea.vmem [#allocation8], %s326
        %p328 = pneg %p136
        %p329 = pneg %p133
        %p330 = pneg %p157
        %p331 = pneg %p154
        %p332 = pneg %p183
        %p333 = pneg %p180
        %s334 = sand.u32 %s170, 1
        %s335 = scalar_lea.sflag [#allocation5], %s334
        %s336 = sand.u32 %s170, 1
        %s337 = smul.addr %s336, 8
        %s338 = scalar_lea.vmem [#allocation9], %s337
        %p339 = scmp.lt.s32.totalorder %s30, 1
        %s340 = scalar_select %p339, %s30, 1
        %s341 = scalar_lea.vmem %s2, %s340
        %s342 = smul.u32 16, %s30
        %v343 = vld [vmem:[%s281] sm:$0xff]
        %v344 = vld [vmem:[%s290] sm:$0xff]
        %v345 = vld [vmem:[%s290 + $0x8] sm:$0xff]
        %v346 = vld [vmem:[%s290 + $0x10] sm:$0xff]
        %v347 = vld [vmem:[%s290 + $0x18] sm:$0xff]
        %v348 = vld [vmem:[%s290 + $0x20] sm:$0xff]
        %v349 = vld [vmem:[%s290 + $0x28] sm:$0xff]
        %v350 = vld [vmem:[%s290 + $0x30] sm:$0xff]
        %v351 = vld [vmem:[%s290 + $0x38] sm:$0xff]
        %v352 = vld [vmem:[%s290 + $0x40] sm:$0xff]
        %v353 = vld [vmem:[%s290 + $0x48] sm:$0xff]
        %v354 = vld [vmem:[%s290 + $0x50] sm:$0xff]
        %v355 = vld [vmem:[%s290 + $0x58] sm:$0xff]
        %v356 = vld [vmem:[%s290 + $0x60] sm:$0xff]
        %v357 = vld [vmem:[%s290 + $0x68] sm:$0xff]
        %v358 = vld [vmem:[%s290 + $0x70] sm:$0xff]
        %v359 = vld [vmem:[%s290 + $0x78] sm:$0xff]
        %v360 = vld [vmem:[%s341] sm:$0x1]
        %v362 = vlaneseq
        %v363 = vshrl.u32 %v362, 7
        %v364 = vsub.s32 0, %v363
        %v365 = vrot.slane %v360, %v364
        %367 = vmatprep.subr.mxu0 0.0
        %368 = vmatpush1.msra.mxu0 %v344
        %369 = vmatprep.subr.mxu0 0.0
        %370 = vmatpush1.msra.mxu0 %v345
        %371 = vmatprep.subr.mxu0 0.0
        %372 = vmatpush1.msra.mxu0 %v346
        %373 = vmatprep.subr.mxu0 0.0
        %374 = vmatpush1.msra.mxu0 %v347
        %375 = vmatprep.subr.mxu0 0.0
        %376 = vmatpush1.msra.mxu0 %v348
        %377 = vmatprep.subr.mxu0 0.0
        %378 = vmatpush1.msra.mxu0 %v349
        %379 = vmatprep.subr.mxu0 0.0
        %380 = vmatpush1.msra.mxu0 %v350
        %381 = vmatprep.subr.mxu0 0.0
        %382 = vmatpush1.msra.mxu0 %v351
        %383 = vmatprep.subr.mxu0 0.0
        %384 = vmatpush1.msra.mxu0 %v352
        %385 = vmatprep.subr.mxu0 0.0
        %386 = vmatpush1.msra.mxu0 %v353
        %387 = vmatprep.subr.mxu0 0.0
        %388 = vmatpush1.msra.mxu0 %v354
        %389 = vmatprep.subr.mxu0 0.0
        %390 = vmatpush1.msra.mxu0 %v355
        %391 = vmatprep.subr.mxu0 0.0
        %392 = vmatpush1.msra.mxu0 %v356
        %393 = vmatprep.subr.mxu0 0.0
        %394 = vmatpush1.msra.mxu0 %v357
        %395 = vmatprep.subr.mxu0 0.0
        %396 = vmatpush1.msra.mxu0 %v358
        %397 = vmatprep.subr.mxu0 0.0
        %398 = vmatpush1.msra.mxu0 %v359
        %399 = vmatprep.subr.mxu0 0.0
        %400 = vmatpush1.msra.mxu0 0.0
        %401 = vmatprep.subr.mxu0 0.0
        %402 = vmatpush1.msra.mxu0 0.0
        %403 = vmatprep.subr.mxu0 0.0
        %404 = vmatpush1.msra.mxu0 0.0
        %405 = vmatprep.subr.mxu0 0.0
        %406 = vmatpush1.msra.mxu0 0.0
        %407 = vmatprep.subr.mxu0 0.0
        %408 = vmatpush1.msra.mxu0 0.0
        %409 = vmatprep.subr.mxu0 0.0
        %410 = vmatpush1.msra.mxu0 0.0
        %411 = vmatprep.subr.mxu0 0.0
        %412 = vmatpush1.msra.mxu0 0.0
        %413 = vmatprep.subr.mxu0 0.0
        %414 = vmatpush1.msra.mxu0 0.0
        %415 = vmatprep.subr.mxu0 0.0
        %416 = vmatpush1.msra.mxu0 0.0
        %417 = vmatprep.subr.mxu0 0.0
        %418 = vmatpush1.msra.mxu0 0.0
        %419 = vmatprep.subr.mxu0 0.0
        %420 = vmatpush1.msra.mxu0 0.0
        %421 = vmatprep.subr.mxu0 0.0
        %422 = vmatpush1.msra.mxu0 0.0
        %423 = vmatprep.subr.mxu0 0.0
        %424 = vmatpush1.msra.mxu0 0.0
        %425 = vmatprep.subr.mxu0 0.0
        %426 = vmatpush1.msra.mxu0 0.0
        %427 = vmatprep.subr.mxu0 0.0
        %428 = vmatpush1.msra.mxu0 0.0
        %429 = vmatprep.subr.mxu0 0.0
        %430 = vmatpush1.msra.mxu0 0.0
        %431 = vmatprep.mubr.f32.mxu0 0.0
        %432 = vmatmul.mubr.f32.gmra.mrb[0].mxu0 %v343
        %v433 = vpop.f32.mrb[0].mxu0
        %v434 = vadd.f32 %v365, %v433
        %v435 = vpop.f32.mrb[0].mxu0
        %436 = vdwg.mxu0
        %v437 = vmax.f32 %v434, 0.0
        %v438 = vld [vmem:[%s299] sm:$0xff]
        %v439 = vld [vmem:[%s299 + $0x8] sm:$0xff]
        %v440 = vld [vmem:[%s299 + $0x10] sm:$0xff]
        %v441 = vld [vmem:[%s299 + $0x18] sm:$0xff]
        %v442 = vld [vmem:[%s299 + $0x20] sm:$0xff]
        %v443 = vld [vmem:[%s299 + $0x28] sm:$0xff]
        %v444 = vld [vmem:[%s299 + $0x30] sm:$0xff]
        %v445 = vld [vmem:[%s299 + $0x38] sm:$0xff]
        %v446 = vld [vmem:[%s299 + $0x40] sm:$0xff]
        %v447 = vld [vmem:[%s299 + $0x48] sm:$0xff]
        %v448 = vld [vmem:[%s299 + $0x50] sm:$0xff]
        %v449 = vld [vmem:[%s299 + $0x58] sm:$0xff]
        %v450 = vld [vmem:[%s299 + $0x60] sm:$0xff]
        %v451 = vld [vmem:[%s299 + $0x68] sm:$0xff]
        %v452 = vld [vmem:[%s299 + $0x70] sm:$0xff]
        %v453 = vld [vmem:[%s299 + $0x78] sm:$0xff]
        %454 = vmatprep.subr.mxu0 0.0
        %455 = vmatpush1.msra.mxu0 %v438
        %456 = vmatprep.subr.mxu0 0.0
        %457 = vmatpush1.msra.mxu0 %v439
        %458 = vmatprep.subr.mxu0 0.0
        %459 = vmatpush1.msra.mxu0 %v440
        %460 = vmatprep.subr.mxu0 0.0
        %461 = vmatpush1.msra.mxu0 %v441
        %462 = vmatprep.subr.mxu0 0.0
        %463 = vmatpush1.msra.mxu0 %v442
        %464 = vmatprep.subr.mxu0 0.0
        %465 = vmatpush1.msra.mxu0 %v443
        %466 = vmatprep.subr.mxu0 0.0
        %467 = vmatpush1.msra.mxu0 %v444
        %468 = vmatprep.subr.mxu0 0.0
        %469 = vmatpush1.msra.mxu0 %v445
        %470 = vmatprep.subr.mxu0 0.0
        %471 = vmatpush1.msra.mxu0 %v446
        %472 = vmatprep.subr.mxu0 0.0
        %473 = vmatpush1.msra.mxu0 %v447
        %474 = vmatprep.subr.mxu0 0.0
        %475 = vmatpush1.msra.mxu0 %v448
        %476 = vmatprep.subr.mxu0 0.0
        %477 = vmatpush1.msra.mxu0 %v449
        %478 = vmatprep.subr.mxu0 0.0
        %479 = vmatpush1.msra.mxu0 %v450
        %480 = vmatprep.subr.mxu0 0.0
        %481 = vmatpush1.msra.mxu0 %v451
        %482 = vmatprep.subr.mxu0 0.0
        %483 = vmatpush1.msra.mxu0 %v452
        %484 = vmatprep.subr.mxu0 0.0
        %485 = vmatpush1.msra.mxu0 %v453
        %486 = vmatprep.subr.mxu0 0.0
        %487 = vmatpush1.msra.mxu0 0.0
        %488 = vmatprep.subr.mxu0 0.0
        %489 = vmatpush1.msra.mxu0 0.0
        %490 = vmatprep.subr.mxu0 0.0
        %491 = vmatpush1.msra.mxu0 0.0
        %492 = vmatprep.subr.mxu0 0.0
        %493 = vmatpush1.msra.mxu0 0.0
        %494 = vmatprep.subr.mxu0 0.0
        %495 = vmatpush1.msra.mxu0 0.0
        %496 = vmatprep.subr.mxu0 0.0
        %497 = vmatpush1.msra.mxu0 0.0
        %498 = vmatprep.subr.mxu0 0.0
        %499 = vmatpush1.msra.mxu0 0.0
        %500 = vmatprep.subr.mxu0 0.0
        %501 = vmatpush1.msra.mxu0 0.0
        %502 = vmatprep.subr.mxu0 0.0
        %503 = vmatpush1.msra.mxu0 0.0
        %504 = vmatprep.subr.mxu0 0.0
        %505 = vmatpush1.msra.mxu0 0.0
        %506 = vmatprep.subr.mxu0 0.0
        %507 = vmatpush1.msra.mxu0 0.0
        %508 = vmatprep.subr.mxu0 0.0
        %509 = vmatpush1.msra.mxu0 0.0
        %510 = vmatprep.subr.mxu0 0.0
        %511 = vmatpush1.msra.mxu0 0.0
        %512 = vmatprep.subr.mxu0 0.0
        %513 = vmatpush1.msra.mxu0 0.0
        %514 = vmatprep.subr.mxu0 0.0
        %515 = vmatpush1.msra.mxu0 0.0
        %516 = vmatprep.subr.mxu0 0.0
        %517 = vmatpush1.msra.mxu0 0.0
        %518 = vmatprep.mubr.f32.mxu0 0.0
        %519 = vmatmul.mubr.f32.gmra.mrb[0].mxu0 %v437
        %v520 = vpop.f32.mrb[0].mxu0
        %v521 = vadd.f32 0.0, %v520
        %v522 = vpop.f32.mrb[0].mxu0
        %523 = vdwg.mxu0
        %p524 = scmp.eq.s32.totalorder %s30, 0
        // Predicated region
        $region53: #{tpu_custom_call.1} parent=39 // pred_check
          %p525 = pneg %p524
        $region54: #{tpu_custom_call.1} parent=39 // pred_check_branch
          %527 = sbr.rel (%p525) target = $region56
        $region55: #{tpu_custom_call.1} parent=39 // pred_region
          %v528 = vld [vmem:[%s4] sm:$0x1]
          %v530 = vlaneseq
          %v531 = vshrl.u32 %v530, 7
          %v532 = vsub.s32 0, %v531
          %v533 = vrot.slane %v528, %v532
          %v535 = vadd.f32 %v521, %v533
          %536 = vst [vmem:[#allocation2] sm:$0xff] %v535
        $region56: #{tpu_custom_call.1} parent=39 // pred_fallthru
          _
        %p537 = scmp.gt.s32.totalorder %s30, 0
        // Predicated region
        $region57: #{tpu_custom_call.1} parent=39 // pred_check
          %p538 = pneg %p537
        $region58: #{tpu_custom_call.1} parent=39 // pred_check_branch
          %540 = sbr.rel (%p538) target = $region60
        $region59: #{tpu_custom_call.1} parent=39 // pred_region
          %v541 = vld [vmem:[#allocation2] sm:$0xff]
          %v542 = vadd.f32 %v541, %v521
          %543 = vst [vmem:[#allocation2] sm:$0xff] %v542
        $region60: #{tpu_custom_call.1} parent=39 // pred_fallthru
          _
        %p544 = scmp.eq.s32.totalorder %s30, 1
        // Predicated region
        $region61: #{tpu_custom_call.1} parent=39 // pred_check
          %p545 = pneg %p544
        $region62: #{tpu_custom_call.1} parent=39 // pred_check_branch
          %547 = sbr.rel (%p545) target = $region64
        $region63: #{tpu_custom_call.1} parent=39 // pred_region
          %v548 = vld [vmem:[#allocation2] sm:$0xff]
          %549 = vst [vmem:[%s338] sm:$0xff] %v548
        $region64: #{tpu_custom_call.1} parent=39 // pred_fallthru
          _
        %s550 = sand.u32 %s170, 1
        %s551 = scalar_lea.sflag [#allocation5], %s550
        %s552 = sand.u32 %s170, 1
        %s553 = smul.addr %s552, 8
        %s554 = scalar_lea.vmem [#allocation9], %s553
        // Predicated region
        $region65: #{tpu_custom_call.1} parent=39 // pred_check
          %p555 = pneg %p180
        $region66: #{tpu_custom_call.1} parent=39 // pred_check_branch
          %557 = sbr.rel (%p555) target = $region68
        $region67: #{tpu_custom_call.1} parent=39 // pred_region
          %s559 = ssub.s32 128, 128
          %560 = vsyncadd %s551, %s559
          %s561 = smul.addr %s29, 128
          %s562 = scalar_lea.hbm %s5, %s561
          %s564 = sshll.u32 %s554, 4
          %s565 = int_to_ptr.vmem [resolvable:$true] %s564
          %567 = dma.vmem_to_hbm [thread:$0]  %s565, 128, %s562, %s551
        $region68: #{tpu_custom_call.1} parent=39 // pred_fallthru
          _
      $region40: #{tpu_custom_call.1} parent=5 // pred_fallthru
        _
      %p568 = scmp.le.s32.totalorder 2, %s20
      // Predicated region
      $region69: #{tpu_custom_call.1} parent=5 // pred_check
        %p569 = pneg %p568
      $region70: #{tpu_custom_call.1} parent=5 // pred_check_branch
        %571 = sbr.rel (%p569) target = $region72
      $region71: #{tpu_custom_call.1} parent=5 // pred_region
        %s572 = ssub.s32 %s20, 2
        // Predicated region
        $region73: #{tpu_custom_call.1} parent=71 // pred_check
          %p573 = pneg %p186
        $region74: #{tpu_custom_call.1} parent=71 // pred_check_branch
          %575 = sbr.rel (%p573) target = $region76
        $region75: #{tpu_custom_call.1} parent=71 // pred_region
          %s576 = sand.u32 %s171, 1
          %s577 = scalar_lea.sflag [#allocation5], %s576
          %s578 = sand.u32 %s171, 1
          %s579 = smul.addr %s578, 8
          %s580 = scalar_lea.vmem [#allocation9], %s579
          %581 = dma.done %s577, 128
        $region76: #{tpu_custom_call.1} parent=71 // pred_fallthru
          _
      $region72: #{tpu_custom_call.1} parent=5 // pred_fallthru
        _
    $region6: #{tpu_custom_call.1} parent=1 // loop_footer
      %s24 = sadd.s32 1, %s20
    $region7: #{tpu_custom_call.1} parent=1 // loop_footer_branch
      %19 = sbr.rel target = $region3
    $region8: #{tpu_custom_call.1} parent=1 // loop_exit
      _
    %582 = vsyncpa [#allocation4], 1
    %s583 = scalar_lea.sflag [#allocation4], 1
    %584 = vsyncpa %s583, 1
    %585 = vsyncpa [#allocation7], 1
    %s586 = scalar_lea.sflag [#allocation7], 1
    %587 = vsyncpa %s586, 1
    %588 = vsyncpa [#allocation5], 1
    %s589 = scalar_lea.sflag [#allocation5], 1
    %590 = vsyncpa %s589, 1

</llo_original>
